<compile_context>
chip_gen: v7x
topology: tpu7x:2x2x1
jax: 0.10.0
libtpu: 0.0.40
codegen_flags: <defaults>
</compile_context>

<pallas_src>
import jax
import jax.numpy as jnp
from jax.experimental import pallas as pl
from jax.experimental.pallas import tpu as pltpu


def _round_up(x, m):
    return ((x + m - 1) // m) * m


# ---------------------------------------------------------------------------
# Pallas kernel: fused concat + Linear + ReLU + Linear (classifier head)
# One grid step == one batch tile; weights stay VMEM-resident across steps.
# ---------------------------------------------------------------------------
def classifier_kernel(t_ref, i_ref, w1t_ref, w1i_ref, b1_ref, w2_ref, b2_ref,
                      logits_ref):
    # hidden = concat([text, image], 1) @ W1 + b1
    #        = text @ W1[:Dt] + image @ W1[Dt:] + b1      (concat fused away)
    h = (jnp.dot(t_ref[...], w1t_ref[...], preferred_element_type=jnp.float32)
         + jnp.dot(i_ref[...], w1i_ref[...], preferred_element_type=jnp.float32)
         + b1_ref[...])
    h = jnp.maximum(h, 0.0)                    # ReLU; dropout is identity at eval
    logits_ref[...] = (
        jnp.dot(h.astype(w2_ref.dtype), w2_ref[...],
                preferred_element_type=jnp.float32)
        + b2_ref[...])


# ---------------------------------------------------------------------------
# One-time weight preparation (hoisted out of the forward path)
# ---------------------------------------------------------------------------
def prepare_classifier_params(w1t, w1i, b1, w2, b2):
    """Pad to 128-lane multiples + cast to bf16 ONCE; cache the results."""
    Dt, F = w1t.shape
    Di = w1i.shape[0]
    C = w2.shape[1]
    Dt_p, Di_p, F_p, C_p = (_round_up(d, 128) for d in (Dt, Di, F, C))

    def pad2(a, rows, cols):
        if a.shape == (rows, cols):
            return a
        return jnp.pad(a, ((0, rows - a.shape[0]), (0, cols - a.shape[1])))

    return {
        "w1t_p": pad2(w1t, Dt_p, F_p).astype(jnp.bfloat16),
        "w1i_p": pad2(w1i, Di_p, F_p).astype(jnp.bfloat16),
        "b1_p":  pad2(b1, 1, F_p).astype(jnp.float32),
        "w2_p":  pad2(w2, F_p, C_p).astype(jnp.bfloat16),
        "b2_p":  pad2(b2, 1, C_p).astype(jnp.float32),
        "dims":  (Dt, Di, F, C),
    }


def _default_batch_tile(B):
    # v6e/v7x: 256-wide MXU -> 256-row M tiles once the batch allows it.
    # v5e: 128-wide MXU -> 128 is already full.  16-row alignment for bf16 packing.
    try:
        kind = jax.devices()[0].device_kind.lower()
    except Exception:  # pragma: no cover - device query should not fail
        kind = ""
    wide_mxu = ("v6" in kind) or ("v7" in kind)
    if wide_mxu and B >= 256:
        return 256
    return min(128, _round_up(max(B, 1), 16))


# ---------------------------------------------------------------------------
# Wrapper: pad activations (no-op when already aligned) and launch the kernel.
# ---------------------------------------------------------------------------
def fused_classifier(text_features, image_features, cls_params, *, batch_tile=None):
    B, Dt = text_features.shape
    _, Di = image_features.shape
    Dt_l, Di_l, F, C = cls_params["dims"]
    assert (Dt, Di) == (Dt_l, Di_l)

    w1t_p, w1i_p = cls_params["w1t_p"], cls_params["w1i_p"]
    b1_p, w2_p, b2_p = cls_params["b1_p"], cls_params["w2_p"], cls_params["b2_p"]
    Dt_p, F_p = w1t_p.shape
    Di_p = w1i_p.shape[0]
    C_p = w2_p.shape[1]

    if batch_tile is None:
        batch_tile = _default_batch_tile(B)
    B_p = _round_up(B, batch_tile)

    def pad_act(a, rows, cols):
        # No extra pass when features are already bf16 and 128-aligned
        # (true at production Dt=768 / Di=2048 with bf16-emitting encoders).
        a = a.astype(jnp.bfloat16)
        if a.shape != (rows, cols):
            a = jnp.pad(a, ((0, rows - a.shape[0]), (0, cols - a.shape[1])))
        return a

    t_p = pad_act(text_features, B_p, Dt_p)
    i_p = pad_act(image_features, B_p, Di_p)

    num_tiles = B_p // batch_tile
    grid = (num_tiles,)

    # Only shard the batch axis across TensorCores (v7x) when there is real work
    # per core; otherwise a 2-way split just duplicates resident-weight DMA.
    if num_tiles >= 4 and num_tiles % 2 == 0:
        dim_semantics = ("parallel",)
    else:
        dim_semantics = ("arbitrary",)

    flops = 2 * B_p * (Dt_p + Di_p) * F_p + 2 * B_p * F_p * C_p
    bytes_accessed = (
        2 * (t_p.size + i_p.size)                              # bf16 activations
        + 2 * (w1t_p.size + w1i_p.size + w2_p.size)            # bf16 weights (once)
        + 4 * (b1_p.size + b2_p.size)                          # f32 biases
        + 4 * B_p * C_p)                                       # f32 logits

    def build(buffered_weights):
        def resident(shape):
            # Constant index_map -> block pinned in VMEM across all B-tiles.
            if buffered_weights:
                return pl.BlockSpec(shape, lambda i: (0, 0),
                                    pipeline_mode=pl.Buffered(1))
            return pl.BlockSpec(shape, lambda i: (0, 0))

        # Explicit VMEM budget from the actual block sizes (+ headroom for the
        # f32 hidden temporary and compiler scratch); the scoped defaults are
        # only 16 MiB (v5e) / 32 MiB (v6e, v7x).
        w_bufs = 1 if buffered_weights else 2
        weight_bytes = w_bufs * (2 * (Dt_p * F_p + Di_p * F_p + F_p * C_p)
                                 + 4 * (F_p + C_p))
        act_bytes = 2 * 2 * batch_tile * (Dt_p + Di_p)         # bf16, double-buffered
        out_bytes = 2 * 4 * batch_tile * C_p                   # f32, double-buffered
        hid_bytes = 4 * batch_tile * F_p                       # f32 hidden temp
        vmem_limit = int(1.3 * (weight_bytes + act_bytes + out_bytes + hid_bytes))
        vmem_limit = min(max(vmem_limit + (2 << 20), 32 << 20), 128 << 20)

        return pl.pallas_call(
            classifier_kernel,
            out_shape=jax.ShapeDtypeStruct((B_p, C_p), jnp.float32),
            grid_spec=pltpu.PrefetchScalarGridSpec(
                num_scalar_prefetch=0,
                grid=grid,
                in_specs=[
                    pl.BlockSpec((batch_tile, Dt_p), lambda i: (i, 0)),  # text tile
                    pl.BlockSpec((batch_tile, Di_p), lambda i: (i, 0)),  # image tile
                    resident((Dt_p, F_p)),   # W1 text half
                    resident((Di_p, F_p)),   # W1 image half
                    resident((1, F_p)),      # b1
                    resident((F_p, C_p)),    # W2
                    resident((1, C_p)),      # b2
                ],
                out_specs=pl.BlockSpec((batch_tile, C_p), lambda i: (i, 0)),
            ),
            compiler_params=pltpu.CompilerParams(
                dimension_semantics=dim_semantics,
                vmem_limit_bytes=vmem_limit,
            ),
            cost_estimate=pl.CostEstimate(
                flops=flops, bytes_accessed=bytes_accessed, transcendentals=0),
        )

    args = (t_p, i_p, w1t_p, w1i_p, b1_p, w2_p, b2_p)
    want_buffered = hasattr(pl, "Buffered")
    try:
        logits_p = build(want_buffered)(*args)
    except Exception:
        if not want_buffered:
            raise
        # Older jax without pipeline_mode support: fall back to default buffering.
        logits_p = build(False)(*args)

    return logits_p[:B, :C]


# ---------------------------------------------------------------------------
# Plain-JAX glue: deterministic synthetic encoders + parameter init
# ---------------------------------------------------------------------------
def baseline_concat_forward(params, input_ids, attention_mask, images):
    """Mirrors BaselineConcat.forward: returns (logits, text_feats, image_feats, None)."""
    # --- stand-in text encoder (see TODO(synk) above) ---
    # BERT: last_hidden_state[:, 0, :]  -> here: embedding of the token at position 0.
    cls_ids = input_ids[:, 0]                                     # [B]
    text_features = params["tok_emb"][cls_ids]                    # [B, Dt] bf16
    del attention_mask  # stand-in encoder ignores the mask

    # --- stand-in image encoder (see TODO(synk) above) ---
    # ResNet50 minus fc: global-average-pool -> flatten; here pool + linear proj.
    B = images.shape[0]
    pooled = jnp.mean(images, axis=(2, 3)).astype(jnp.bfloat16)   # [B, 3]  (NCHW pool)
    image_features = (pooled @ params["img_proj"]).astype(jnp.bfloat16)  # [B, Di] bf16
    image_features = image_features.reshape(B, -1)

    # --- classifier head (Pallas kernel, cached padded bf16 weights) ---
    logits = fused_classifier(text_features, image_features, params["classifier"])
    return logits, text_features, image_features, None


def init_params(key, vocab_size, text_dim, image_dim, fusion_dim, num_classes):
    ks = jax.random.split(key, 6)
    scale1 = 1.0 / jnp.sqrt(jnp.float32(text_dim + image_dim))
    scale2 = 1.0 / jnp.sqrt(jnp.float32(fusion_dim))
    # classifier: nn.Linear(text_dim + image_dim, fusion_dim) split into two halves,
    # plus nn.Linear(fusion_dim, num_classes)
    w1t = jax.random.uniform(ks[2], (text_dim, fusion_dim), jnp.float32, -scale1, scale1)
    w1i = jax.random.uniform(ks[3], (image_dim, fusion_dim), jnp.float32, -scale1, scale1)
    b1 = jnp.zeros((1, fusion_dim), jnp.float32)
    w2 = jax.random.uniform(ks[4], (fusion_dim, num_classes), jnp.float32, -scale2, scale2)
    b2 = jnp.zeros((1, num_classes), jnp.float32)
    return {
        # stand-in encoder params (emit bf16 features directly)
        "tok_emb":  (jax.random.normal(ks[0], (vocab_size, text_dim), jnp.float32)
                     * 0.02).astype(jnp.bfloat16),
        "img_proj": (jax.random.normal(ks[1], (3, image_dim), jnp.float32)
                     * 0.02).astype(jnp.bfloat16),
        # raw f32 classifier weights (reference / training-side copy)
        "w1t": w1t, "w1i": w1i, "b1": b1, "w2": w2, "b2": b2,
        # padded bf16 copies, built ONCE and reused by every forward call
        "classifier": prepare_classifier_params(w1t, w1i, b1, w2, b2),
    }


if __name__ == "__main__":
    # Small config consistent with the module's forward.
    # (Benchmark-quality conclusions require real BERT/ResNet sizes: B>=128,
    #  Dt=768, Di=2048 — this config only validates correctness.)
    B, SEQ, H, W = 2, 8, 16, 16
    VOCAB = 100
    TEXT_DIM, IMAGE_DIM = 32, 64        # stand-ins for 768 (BERT) / 2048 (ResNet50)
    FUSION_DIM, NUM_CLASSES = 32, 4

    key = jax.random.PRNGKey(0)
    k_p, k_ids, k_img = jax.random.split(key, 3)

    params = init_params(k_p, VOCAB, TEXT_DIM, IMAGE_DIM, FUSION_DIM, NUM_CLASSES)

    input_ids = jax.random.randint(k_ids, (B, SEQ), 0, VOCAB, dtype=jnp.int32)
    attention_mask = jnp.ones((B, SEQ), jnp.int32)
    images = jax.random.normal(k_img, (B, 3, H, W), jnp.float32)   # NCHW

    logits, text_feats, image_feats, aux = baseline_concat_forward(
        params, input_ids, attention_mask, images)
    jax.block_until_ready((logits, text_feats, image_feats))

    # Reference check (plain JAX) matching the kernel's bf16-operand / f32-accumulate path.
    to_bf = lambda a: a.astype(jnp.bfloat16)
    concat_bf = jnp.concatenate([to_bf(text_feats), to_bf(image_feats)], axis=1)
    w1_bf = jnp.concatenate([to_bf(params["w1t"]), to_bf(params["w1i"])], axis=0)
    h_ref = jnp.maximum(
        jnp.dot(concat_bf, w1_bf, preferred_element_type=jnp.float32) + params["b1"],
        0.0)
    ref = (jnp.dot(to_bf(h_ref), to_bf(params["w2"]),
                   preferred_element_type=jnp.float32) + params["b2"])

    assert logits.shape == (B, NUM_CLASSES)
    assert aux is None
    assert jnp.allclose(logits, ref, atol=1e-4, rtol=1e-2)

    print("KERNEL_OK")
</pallas_src>

<mosaic_0001>
module attributes {stable_mosaic.version = 11 : i64} {
  func.func @classifier_kernel(%arg0: i32, %arg1: memref<16x128xbf16, #tpu.memory_space<vmem>>, %arg2: memref<16x128xbf16, #tpu.memory_space<vmem>>, %arg3: memref<128x128xbf16, #tpu.memory_space<vmem>>, %arg4: memref<128x128xbf16, #tpu.memory_space<vmem>>, %arg5: memref<1x128xf32, #tpu.memory_space<vmem>>, %arg6: memref<128x128xbf16, #tpu.memory_space<vmem>>, %arg7: memref<1x128xf32, #tpu.memory_space<vmem>>, %arg8: memref<16x128xf32, #tpu.memory_space<vmem>>) attributes {dimension_semantics = [#tpu.dimension_semantics<arbitrary>], iteration_bounds = array<i64: 1>, scalar_prefetch = 0 : i64, scratch_operands = 0 : i64, tpu.core_type = #tpu.core_type<tc>, window_params = [{transform_indices = @transform_0, window_bounds = array<i64: 16, 128>}, {transform_indices = @transform_1, window_bounds = array<i64: 16, 128>}, {pipeline_mode = #tpu.pipeline_mode<synchronous>, transform_indices = @transform_2, window_bounds = array<i64: 128, 128>}, {pipeline_mode = #tpu.pipeline_mode<synchronous>, transform_indices = @transform_3, window_bounds = array<i64: 128, 128>}, {pipeline_mode = #tpu.pipeline_mode<synchronous>, transform_indices = @transform_4, window_bounds = array<i64: 1, 128>}, {pipeline_mode = #tpu.pipeline_mode<synchronous>, transform_indices = @transform_5, window_bounds = array<i64: 128, 128>}, {pipeline_mode = #tpu.pipeline_mode<synchronous>, transform_indices = @transform_6, window_bounds = array<i64: 1, 128>}, {transform_indices = @transform_7, window_bounds = array<i64: 16, 128>}]} {
    %c0 = arith.constant 0 : index
    %c0_0 = arith.constant 0 : index
    %0 = vector.load %arg1[%c0, %c0_0] : memref<16x128xbf16, #tpu.memory_space<vmem>>, vector<16x128xbf16>
    %c0_1 = arith.constant 0 : index
    %c0_2 = arith.constant 0 : index
    %1 = vector.load %arg3[%c0_1, %c0_2] : memref<128x128xbf16, #tpu.memory_space<vmem>>, vector<128x128xbf16>
    %cst = arith.constant dense<0.000000e+00> : vector<16x128xf32>
    %2 = tpu.matmul %0, %1, %cst {dimension_numbers = #tpu.dot_dimension_numbers<[1], [0], [0], [1], [0, 0, 1, 1], [], []>} : vector<16x128xbf16>, vector<128x128xbf16>, vector<16x128xf32> -> vector<16x128xf32>
    %c0_3 = arith.constant 0 : index
    %c0_4 = arith.constant 0 : index
    %3 = vector.load %arg2[%c0_3, %c0_4] : memref<16x128xbf16, #tpu.memory_space<vmem>>, vector<16x128xbf16>
    %c0_5 = arith.constant 0 : index
    %c0_6 = arith.constant 0 : index
    %4 = vector.load %arg4[%c0_5, %c0_6] : memref<128x128xbf16, #tpu.memory_space<vmem>>, vector<128x128xbf16>
    %cst_7 = arith.constant dense<0.000000e+00> : vector<16x128xf32>
    %5 = tpu.matmul %3, %4, %cst_7 {dimension_numbers = #tpu.dot_dimension_numbers<[1], [0], [0], [1], [0, 0, 1, 1], [], []>} : vector<16x128xbf16>, vector<128x128xbf16>, vector<16x128xf32> -> vector<16x128xf32>
    %6 = arith.addf %2, %5 : vector<16x128xf32>
    %c0_8 = arith.constant 0 : index
    %c0_9 = arith.constant 0 : index
    %7 = vector.load %arg5[%c0_8, %c0_9] : memref<1x128xf32, #tpu.memory_space<vmem>>, vector<1x128xf32>
    %8 = vector.broadcast %7 : vector<1x128xf32> to vector<16x128xf32>
    %9 = arith.addf %6, %8 : vector<16x128xf32>
    %cst_10 = arith.constant 0.000000e+00 : f32
    %10 = vector.broadcast %cst_10 : f32 to vector<16x128xf32>
    %11 = arith.maximumf %9, %10 : vector<16x128xf32>
    %12 = arith.truncf %11 : vector<16x128xf32> to vector<16x128xbf16>
    %c0_11 = arith.constant 0 : index
    %c0_12 = arith.constant 0 : index
    %13 = vector.load %arg6[%c0_11, %c0_12] : memref<128x128xbf16, #tpu.memory_space<vmem>>, vector<128x128xbf16>
    %cst_13 = arith.constant dense<0.000000e+00> : vector<16x128xf32>
    %14 = tpu.matmul %12, %13, %cst_13 {dimension_numbers = #tpu.dot_dimension_numbers<[1], [0], [0], [1], [0, 0, 1, 1], [], []>} : vector<16x128xbf16>, vector<128x128xbf16>, vector<16x128xf32> -> vector<16x128xf32>
    %c0_14 = arith.constant 0 : index
    %c0_15 = arith.constant 0 : index
    %15 = vector.load %arg7[%c0_14, %c0_15] : memref<1x128xf32, #tpu.memory_space<vmem>>, vector<1x128xf32>
    %16 = vector.broadcast %15 : vector<1x128xf32> to vector<16x128xf32>
    %17 = arith.addf %14, %16 : vector<16x128xf32>
    %c0_16 = arith.constant 0 : index
    %c0_17 = arith.constant 0 : index
    %18 = vector.load %arg8[%c0_16, %c0_17] : memref<16x128xf32, #tpu.memory_space<vmem>>, vector<16x128xf32>
    tpu.vector_store %arg8[%c0_16, %c0_17], %17 {strides = array<i32>} : memref<16x128xf32, #tpu.memory_space<vmem>>, vector<16x128xf32>,
    return
  }
  func.func @transform_0(%arg0: i32) -> (i32, i32) {
    %c0_i32 = arith.constant 0 : i32
    %c0_i32_0 = arith.constant 0 : i32
    return %arg0, %c0_i32 : i32, i32
  }
  func.func @transform_1(%arg0: i32) -> (i32, i32) {
    %c0_i32 = arith.constant 0 : i32
    %c0_i32_0 = arith.constant 0 : i32
    return %arg0, %c0_i32 : i32, i32
  }
  func.func @transform_2(%arg0: i32) -> (i32, i32) {
    %c0_i32 = arith.constant 0 : i32
    %c0_i32_0 = arith.constant 0 : i32
    %c0_i32_1 = arith.constant 0 : i32
    return %c0_i32, %c0_i32_0 : i32, i32
  }
  func.func @transform_3(%arg0: i32) -> (i32, i32) {
    %c0_i32 = arith.constant 0 : i32
    %c0_i32_0 = arith.constant 0 : i32
    %c0_i32_1 = arith.constant 0 : i32
    return %c0_i32, %c0_i32_0 : i32, i32
  }
  func.func @transform_4(%arg0: i32) -> (i32, i32) {
    %c0_i32 = arith.constant 0 : i32
    %c0_i32_0 = arith.constant 0 : i32
    %c0_i32_1 = arith.constant 0 : i32
    return %c0_i32, %c0_i32_0 : i32, i32
  }
  func.func @transform_5(%arg0: i32) -> (i32, i32) {
    %c0_i32 = arith.constant 0 : i32
    %c0_i32_0 = arith.constant 0 : i32
    %c0_i32_1 = arith.constant 0 : i32
    return %c0_i32, %c0_i32_0 : i32, i32
  }
  func.func @transform_6(%arg0: i32) -> (i32, i32) {
    %c0_i32 = arith.constant 0 : i32
    %c0_i32_0 = arith.constant 0 : i32
    %c0_i32_1 = arith.constant 0 : i32
    return %c0_i32, %c0_i32_0 : i32, i32
  }
  func.func @transform_7(%arg0: i32) -> (i32, i32) {
    %c0_i32 = arith.constant 0 : i32
    %c0_i32_0 = arith.constant 0 : i32
    return %arg0, %c0_i32 : i32, i32
  }
}

module attributes {stable_mosaic.version = 11 : i64} {
  func.func @classifier_kernel(%arg0: i32, %arg1: memref<16x128xbf16, #tpu.memory_space<vmem>>, %arg2: memref<16x128xbf16, #tpu.memory_space<vmem>>, %arg3: memref<128x128xbf16, #tpu.memory_space<vmem>>, %arg4: memref<128x128xbf16, #tpu.memory_space<vmem>>, %arg5: memref<1x128xf32, #tpu.memory_space<vmem>>, %arg6: memref<128x128xbf16, #tpu.memory_space<vmem>>, %arg7: memref<1x128xf32, #tpu.memory_space<vmem>>, %arg8: memref<16x128xf32, #tpu.memory_space<vmem>>) attributes {dimension_semantics = [#tpu.dimension_semantics<arbitrary>], iteration_bounds = array<i64: 1>, scalar_prefetch = 0 : i64, scratch_operands = 0 : i64, tpu.core_type = #tpu.core_type<tc>, window_params = [{transform_indices = @transform_0, window_bounds = array<i64: 16, 128>}, {transform_indices = @transform_1, window_bounds = array<i64: 16, 128>}, {pipeline_mode = #tpu.pipeline_mode<synchronous>, transform_indices = @transform_2, window_bounds = array<i64: 128, 128>}, {pipeline_mode = #tpu.pipeline_mode<synchronous>, transform_indices = @transform_3, window_bounds = array<i64: 128, 128>}, {pipeline_mode = #tpu.pipeline_mode<synchronous>, transform_indices = @transform_4, window_bounds = array<i64: 1, 128>}, {pipeline_mode = #tpu.pipeline_mode<synchronous>, transform_indices = @transform_5, window_bounds = array<i64: 128, 128>}, {pipeline_mode = #tpu.pipeline_mode<synchronous>, transform_indices = @transform_6, window_bounds = array<i64: 1, 128>}, {transform_indices = @transform_7, window_bounds = array<i64: 16, 128>}]} {
    %c0 = arith.constant 0 : index
    %c0_0 = arith.constant 0 : index
    %0 = vector.load %arg1[%c0, %c0_0] : memref<16x128xbf16, #tpu.memory_space<vmem>>, vector<16x128xbf16>
    %c0_1 = arith.constant 0 : index
    %c0_2 = arith.constant 0 : index
    %1 = vector.load %arg3[%c0_1, %c0_2] : memref<128x128xbf16, #tpu.memory_space<vmem>>, vector<128x128xbf16>
    %cst = arith.constant dense<0.000000e+00> : vector<16x128xf32>
    %2 = tpu.matmul %0, %1, %cst {dimension_numbers = #tpu.dot_dimension_numbers<[1], [0], [0], [1], [0, 0, 1, 1], [], []>} : vector<16x128xbf16>, vector<128x128xbf16>, vector<16x128xf32> -> vector<16x128xf32>
    %c0_3 = arith.constant 0 : index
    %c0_4 = arith.constant 0 : index
    %3 = vector.load %arg2[%c0_3, %c0_4] : memref<16x128xbf16, #tpu.memory_space<vmem>>, vector<16x128xbf16>
    %c0_5 = arith.constant 0 : index
    %c0_6 = arith.constant 0 : index
    %4 = vector.load %arg4[%c0_5, %c0_6] : memref<128x128xbf16, #tpu.memory_space<vmem>>, vector<128x128xbf16>
    %cst_7 = arith.constant dense<0.000000e+00> : vector<16x128xf32>
    %5 = tpu.matmul %3, %4, %cst_7 {dimension_numbers = #tpu.dot_dimension_numbers<[1], [0], [0], [1], [0, 0, 1, 1], [], []>} : vector<16x128xbf16>, vector<128x128xbf16>, vector<16x128xf32> -> vector<16x128xf32>
    %6 = arith.addf %2, %5 : vector<16x128xf32>
    %c0_8 = arith.constant 0 : index
    %c0_9 = arith.constant 0 : index
    %7 = vector.load %arg5[%c0_8, %c0_9] : memref<1x128xf32, #tpu.memory_space<vmem>>, vector<1x128xf32>
    %8 = vector.broadcast %7 : vector<1x128xf32> to vector<16x128xf32>
    %9 = arith.addf %6, %8 : vector<16x128xf32>
    %cst_10 = arith.constant 0.000000e+00 : f32
    %10 = vector.broadcast %cst_10 : f32 to vector<16x128xf32>
    %11 = arith.maximumf %9, %10 : vector<16x128xf32>
    %12 = arith.truncf %11 : vector<16x128xf32> to vector<16x128xbf16>
    %c0_11 = arith.constant 0 : index
    %c0_12 = arith.constant 0 : index
    %13 = vector.load %arg6[%c0_11, %c0_12] : memref<128x128xbf16, #tpu.memory_space<vmem>>, vector<128x128xbf16>
    %cst_13 = arith.constant dense<0.000000e+00> : vector<16x128xf32>
    %14 = tpu.matmul %12, %13, %cst_13 {dimension_numbers = #tpu.dot_dimension_numbers<[1], [0], [0], [1], [0, 0, 1, 1], [], []>} : vector<16x128xbf16>, vector<128x128xbf16>, vector<16x128xf32> -> vector<16x128xf32>
    %c0_14 = arith.constant 0 : index
    %c0_15 = arith.constant 0 : index
    %15 = vector.load %arg7[%c0_14, %c0_15] : memref<1x128xf32, #tpu.memory_space<vmem>>, vector<1x128xf32>
    %16 = vector.broadcast %15 : vector<1x128xf32> to vector<16x128xf32>
    %17 = arith.addf %14, %16 : vector<16x128xf32>
    %c0_16 = arith.constant 0 : index
    %c0_17 = arith.constant 0 : index
    %18 = vector.load %arg8[%c0_16, %c0_17] : memref<16x128xf32, #tpu.memory_space<vmem>>, vector<16x128xf32>
    tpu.vector_store %arg8[%c0_16, %c0_17], %17 {strides = array<i32>} : memref<16x128xf32, #tpu.memory_space<vmem>>, vector<16x128xf32>,
    return
  }
  func.func @transform_0(%arg0: i32) -> (i32, i32) {
    %c0_i32 = arith.constant 0 : i32
    %c0_i32_0 = arith.constant 0 : i32
    return %arg0, %c0_i32 : i32, i32
  }
  func.func @transform_1(%arg0: i32) -> (i32, i32) {
    %c0_i32 = arith.constant 0 : i32
    %c0_i32_0 = arith.constant 0 : i32
    return %arg0, %c0_i32 : i32, i32
  }
  func.func @transform_2(%arg0: i32) -> (i32, i32) {
    %c0_i32 = arith.constant 0 : i32
    %c0_i32_0 = arith.constant 0 : i32
    %c0_i32_1 = arith.constant 0 : i32
    return %c0_i32, %c0_i32_0 : i32, i32
  }
  func.func @transform_3(%arg0: i32) -> (i32, i32) {
    %c0_i32 = arith.constant 0 : i32
    %c0_i32_0 = arith.constant 0 : i32
    %c0_i32_1 = arith.constant 0 : i32
    return %c0_i32, %c0_i32_0 : i32, i32
  }
  func.func @transform_4(%arg0: i32) -> (i32, i32) {
    %c0_i32 = arith.constant 0 : i32
    %c0_i32_0 = arith.constant 0 : i32
    %c0_i32_1 = arith.constant 0 : i32
    return %c0_i32, %c0_i32_0 : i32, i32
  }
  func.func @transform_5(%arg0: i32) -> (i32, i32) {
    %c0_i32 = arith.constant 0 : i32
    %c0_i32_0 = arith.constant 0 : i32
    %c0_i32_1 = arith.constant 0 : i32
    return %c0_i32, %c0_i32_0 : i32, i32
  }
  func.func @transform_6(%arg0: i32) -> (i32, i32) {
    %c0_i32 = arith.constant 0 : i32
    %c0_i32_0 = arith.constant 0 : i32
    %c0_i32_1 = arith.constant 0 : i32
    return %c0_i32, %c0_i32_0 : i32, i32
  }
  func.func @transform_7(%arg0: i32) -> (i32, i32) {
    %c0_i32 = arith.constant 0 : i32
    %c0_i32_0 = arith.constant 0 : i32
    return %arg0, %c0_i32 : i32, i32
  }
}

</mosaic_0001>

<llo_original>
// kernel: tpu_custom_call.1
$region0: #{tpu_custom_call.1}
  #allocation0 [shape = 'u32[]', space=smem, size = 0x4, offset = 0x4, fixed_abs, tag = 'smem constant byte address 0x4 - core index']
  #allocation1 [shape = 'u32[144,128]{1,0:T(1,128)}', space=vmem, size = 0x12000, scoped, tag = 'internal scratch']
  %s0 = inlined_call_operand.hbm [shape: bf16[16,128], index: 0, kind: input, shape index: {}]
  %s1 = inlined_call_operand.hbm [shape: bf16[16,128], index: 1, kind: input, shape index: {}]
  %s2 = inlined_call_operand.hbm [shape: bf16[128,128], index: 2, kind: input, shape index: {}]
  %s3 = inlined_call_operand.hbm [shape: bf16[128,128], index: 3, kind: input, shape index: {}]
  %s4 = inlined_call_operand.vmem [shape: f32[1,128], index: 4, kind: input, shape index: {}]
  %s5 = inlined_call_operand.hbm [shape: bf16[128,128], index: 5, kind: input, shape index: {}]
  %s6 = inlined_call_operand.vmem [shape: f32[1,128], index: 6, kind: input, shape index: {}]
  %s7 = inlined_call_operand.hbm [shape: f32[16,128], index: 7, kind: output, shape index: {}]
  %s8 = sld [smem:[#allocation0]]
  $region58: #{tpu_custom_call.1} parent=0
    _
  %s10 = ssub.s32 1, %s8
  %s11 = scalar_select 0, %s10, %s8
  $region1: #{tpu_custom_call.1} parent=0
    #allocation2 [shape = 'u8[4096]{0}', space=vmem, size = 0x1000, scoped, tag = 'input window, operand 0, single buffered']
    #allocation3 [shape = 's32[1]{0}', space=sflag, size = 0x4, scoped, tag = 'scoped memory for tpu_custom_call.1']
    #allocation4 [shape = 's32[1]{0}', space=sflag, size = 0x4, scoped, tag = 'scoped memory for tpu_custom_call.1']
    #allocation5 [shape = 'u8[4096]{0}', space=vmem, size = 0x1000, scoped, tag = 'input window, operand 1, single buffered']
    #allocation6 [shape = 's32[1]{0}', space=sflag, size = 0x4, scoped, tag = 'scoped memory for tpu_custom_call.1']
    #allocation7 [shape = 'u8[32768]{0}', space=vmem, size = 0x8000, scoped, tag = 'input window, operand 2, single buffered']
    #allocation8 [shape = 'u8[32768]{0}', space=vmem, size = 0x8000, scoped, tag = 'input window, operand 3, single buffered']
    #allocation9 [shape = 's32[1]{0}', space=sflag, size = 0x4, scoped, tag = 'scoped memory for tpu_custom_call.1']
    #allocation10 [shape = 'u8[32768]{0}', space=vmem, size = 0x8000, scoped, tag = 'input window, operand 5, single buffered']
    #allocation11 [shape = 'u8[8192]{0}', space=vmem, size = 0x2000, scoped, tag = 'output window, operand 0, single buffered']
    %12 = vsyncpa [#allocation3], 0
    %13 = vsyncpa [#allocation6], 0
    %14 = vsyncpa [#allocation9], 0
    %15 = vsyncpa [#allocation4], 0
    // Predicated region
    $region2: #{tpu_custom_call.1} parent=1 // pred_check
      _
    $region3: #{tpu_custom_call.1} parent=1 // pred_check_branch
      %17 = sbr.rel (0) target = $region5
    $region4: #{tpu_custom_call.1} parent=1 // pred_region
      %s19 = ssub.s32 128, 128
      %20 = vsyncadd [#allocation3], %s19
      %s21 = sshll.u32 [#allocation2], 4
      %s22 = int_to_ptr.vmem [resolvable:$true] %s21
      %27 = dma.hbm_to_vmem [thread:$0]  %s0, 128, %s22, [#allocation3], 64, 64, 4
    $region5: #{tpu_custom_call.1} parent=1 // pred_fallthru
      _
    // Predicated region
    $region6: #{tpu_custom_call.1} parent=1 // pred_check
      _
    $region7: #{tpu_custom_call.1} parent=1 // pred_check_branch
      %29 = sbr.rel (0) target = $region9
    $region8: #{tpu_custom_call.1} parent=1 // pred_region
      %s31 = ssub.s32 128, 128
      %32 = vsyncadd [#allocation6], %s31
      %s33 = sshll.u32 [#allocation5], 4
      %s34 = int_to_ptr.vmem [resolvable:$true] %s33
      %39 = dma.hbm_to_vmem [thread:$0]  %s1, 128, %s34, [#allocation6], 64, 64, 4
    $region9: #{tpu_custom_call.1} parent=1 // pred_fallthru
      _
    // Predicated region
    $region10: #{tpu_custom_call.1} parent=1 // pred_check
      _
    $region11: #{tpu_custom_call.1} parent=1 // pred_check_branch
      %41 = sbr.rel (0) target = $region13
    $region12: #{tpu_custom_call.1} parent=1 // pred_region
      %s43 = ssub.s32 1024, 1024
      %44 = vsyncadd [#allocation6], %s43
      %s45 = sshll.u32 [#allocation7], 4
      %s46 = int_to_ptr.vmem [resolvable:$true] %s45
      %51 = dma.hbm_to_vmem [thread:$0]  %s2, 1024, %s46, [#allocation6], 64, 64, 4
    $region13: #{tpu_custom_call.1} parent=1 // pred_fallthru
      _
    // Predicated region
    $region14: #{tpu_custom_call.1} parent=1 // pred_check
      _
    $region15: #{tpu_custom_call.1} parent=1 // pred_check_branch
      %53 = sbr.rel (0) target = $region17
    $region16: #{tpu_custom_call.1} parent=1 // pred_region
      %s55 = ssub.s32 1024, 1024
      %56 = vsyncadd [#allocation9], %s55
      %s57 = sshll.u32 [#allocation8], 4
      %s58 = int_to_ptr.vmem [resolvable:$true] %s57
      %63 = dma.hbm_to_vmem [thread:$0]  %s3, 1024, %s58, [#allocation9], 64, 64, 4
    $region17: #{tpu_custom_call.1} parent=1 // pred_fallthru
      _
    // Predicated region
    $region18: #{tpu_custom_call.1} parent=1 // pred_check
      _
    $region19: #{tpu_custom_call.1} parent=1 // pred_check_branch
      %65 = sbr.rel (0) target = $region21
    $region20: #{tpu_custom_call.1} parent=1 // pred_region
      _
    $region21: #{tpu_custom_call.1} parent=1 // pred_fallthru
      _
    // Predicated region
    $region22: #{tpu_custom_call.1} parent=1 // pred_check
      _
    $region23: #{tpu_custom_call.1} parent=1 // pred_check_branch
      %67 = sbr.rel (0) target = $region25
    $region24: #{tpu_custom_call.1} parent=1 // pred_region
      %s69 = ssub.s32 1024, 1024
      %70 = vsyncadd [#allocation9], %s69
      %s71 = sshll.u32 [#allocation10], 4
      %s72 = int_to_ptr.vmem [resolvable:$true] %s71
      %77 = dma.hbm_to_vmem [thread:$0]  %s5, 1024, %s72, [#allocation9], 64, 64, 4
    $region25: #{tpu_custom_call.1} parent=1 // pred_fallthru
      _
    // Predicated region
    $region26: #{tpu_custom_call.1} parent=1 // pred_check
      _
    $region27: #{tpu_custom_call.1} parent=1 // pred_check_branch
      %79 = sbr.rel (0) target = $region29
    $region28: #{tpu_custom_call.1} parent=1 // pred_region
      _
    $region29: #{tpu_custom_call.1} parent=1 // pred_fallthru
      _
    // Predicated region
    $region30: #{tpu_custom_call.1} parent=1 // pred_check
      _
    $region31: #{tpu_custom_call.1} parent=1 // pred_check_branch
      %81 = sbr.rel (0) target = $region33
    $region32: #{tpu_custom_call.1} parent=1 // pred_region
      %82 = dma.done [#allocation3], 128
    $region33: #{tpu_custom_call.1} parent=1 // pred_fallthru
      _
    // Predicated region
    $region34: #{tpu_custom_call.1} parent=1 // pred_check
      _
    $region35: #{tpu_custom_call.1} parent=1 // pred_check_branch
      %84 = sbr.rel (0) target = $region37
    $region36: #{tpu_custom_call.1} parent=1 // pred_region
      %85 = dma.done [#allocation6], 128
    $region37: #{tpu_custom_call.1} parent=1 // pred_fallthru
      _
    // Predicated region
    $region38: #{tpu_custom_call.1} parent=1 // pred_check
      _
    $region39: #{tpu_custom_call.1} parent=1 // pred_check_branch
      %87 = sbr.rel (0) target = $region41
    $region40: #{tpu_custom_call.1} parent=1 // pred_region
      %88 = dma.done [#allocation6], 1024
    $region41: #{tpu_custom_call.1} parent=1 // pred_fallthru
      _
    // Predicated region
    $region42: #{tpu_custom_call.1} parent=1 // pred_check
      _
    $region43: #{tpu_custom_call.1} parent=1 // pred_check_branch
      %90 = sbr.rel (0) target = $region45
    $region44: #{tpu_custom_call.1} parent=1 // pred_region
      %91 = dma.done [#allocation9], 1024
    $region45: #{tpu_custom_call.1} parent=1 // pred_fallthru
      _
    // Predicated region
    $region46: #{tpu_custom_call.1} parent=1 // pred_check
      _
    $region47: #{tpu_custom_call.1} parent=1 // pred_check_branch
      %93 = sbr.rel (0) target = $region49
    $region48: #{tpu_custom_call.1} parent=1 // pred_region
      %94 = dma.done [#allocation9], 1024
    $region49: #{tpu_custom_call.1} parent=1 // pred_fallthru
      _
    %v96 = vld [vmem:[#allocation2] sm:$0xf]
    %v97 = vld [vmem:[#allocation2 + $0x4] sm:$0xf]
    %v98 = vld [vmem:[#allocation7] sm:$0xf]
    %v99 = vld [vmem:[#allocation7 + $0x4] sm:$0xf]
    %v100 = vld [vmem:[#allocation7 + $0x8] sm:$0xf]
    %v101 = vld [vmem:[#allocation7 + $0xc] sm:$0xf]
    %v102 = vld [vmem:[#allocation7 + $0x10] sm:$0xf]
    %v103 = vld [vmem:[#allocation7 + $0x14] sm:$0xf]
    %v104 = vld [vmem:[#allocation7 + $0x18] sm:$0xf]
    %v105 = vld [vmem:[#allocation7 + $0x1c] sm:$0xf]
    %v106 = vld [vmem:[#allocation7 + $0x20] sm:$0xf]
    %v107 = vld [vmem:[#allocation7 + $0x24] sm:$0xf]
    %v108 = vld [vmem:[#allocation7 + $0x28] sm:$0xf]
    %v109 = vld [vmem:[#allocation7 + $0x2c] sm:$0xf]
    %v110 = vld [vmem:[#allocation7 + $0x30] sm:$0xf]
    %v111 = vld [vmem:[#allocation7 + $0x34] sm:$0xf]
    %v112 = vld [vmem:[#allocation7 + $0x38] sm:$0xf]
    %v113 = vld [vmem:[#allocation7 + $0x3c] sm:$0xf]
    %v114 = vld [vmem:[#allocation5] sm:$0xf]
    %v115 = vld [vmem:[#allocation5 + $0x4] sm:$0xf]
    %v116 = vld [vmem:[#allocation8] sm:$0xf]
    %v117 = vld [vmem:[#allocation8 + $0x4] sm:$0xf]
    %v118 = vld [vmem:[#allocation8 + $0x8] sm:$0xf]
    %v119 = vld [vmem:[#allocation8 + $0xc] sm:$0xf]
    %v120 = vld [vmem:[#allocation8 + $0x10] sm:$0xf]
    %v121 = vld [vmem:[#allocation8 + $0x14] sm:$0xf]
    %v122 = vld [vmem:[#allocation8 + $0x18] sm:$0xf]
    %v123 = vld [vmem:[#allocation8 + $0x1c] sm:$0xf]
    %v124 = vld [vmem:[#allocation8 + $0x20] sm:$0xf]
    %v125 = vld [vmem:[#allocation8 + $0x24] sm:$0xf]
    %v126 = vld [vmem:[#allocation8 + $0x28] sm:$0xf]
    %v127 = vld [vmem:[#allocation8 + $0x2c] sm:$0xf]
    %v128 = vld [vmem:[#allocation8 + $0x30] sm:$0xf]
    %v129 = vld [vmem:[#allocation8 + $0x34] sm:$0xf]
    %v130 = vld [vmem:[#allocation8 + $0x38] sm:$0xf]
    %v131 = vld [vmem:[#allocation8 + $0x3c] sm:$0xf]
    %v134 = vunpack.c.l.b16 %v114
    %v135 = vunpack.c.l.b16 %v115
    %v136 = vpack.c.b16 %v135, %v134
    %v154 = vunpack.c.l.b16 %v116
    %v155 = vunpack.c.l.b16 %v117
    %v156 = vunpack.c.l.b16 %v118
    %v157 = vunpack.c.l.b16 %v119
    %v158 = vunpack.c.l.b16 %v120
    %v159 = vunpack.c.l.b16 %v121
    %v160 = vunpack.c.l.b16 %v122
    %v161 = vunpack.c.l.b16 %v123
    %v162 = vunpack.c.l.b16 %v124
    %v163 = vunpack.c.l.b16 %v125
    %v164 = vunpack.c.l.b16 %v126
    %v165 = vunpack.c.l.b16 %v127
    %v166 = vunpack.c.l.b16 %v128
    %v167 = vunpack.c.l.b16 %v129
    %v168 = vunpack.c.l.b16 %v130
    %v169 = vunpack.c.l.b16 %v131
    %v170 = vpack.c.b16 %v155, %v154
    %v171 = vpack.c.b16 %v157, %v156
    %v172 = vpack.c.b16 %v159, %v158
    %v173 = vpack.c.b16 %v161, %v160
    %v174 = vpack.c.b16 %v163, %v162
    %v175 = vpack.c.b16 %v165, %v164
    %v176 = vpack.c.b16 %v167, %v166
    %v177 = vpack.c.b16 %v169, %v168
    %186 = vmatprep.subr.bf16.mxu0 0
    %187 = vmatpush1.bf16.msra.mxu0 %v170
    %188 = vmatprep.subr.bf16.mxu0 0
    %189 = vmatpush1.bf16.msra.mxu0 %v171
    %190 = vmatprep.subr.bf16.mxu0 0
    %191 = vmatpush1.bf16.msra.mxu0 %v172
    %192 = vmatprep.subr.bf16.mxu0 0
    %193 = vmatpush1.bf16.msra.mxu0 %v173
    %194 = vmatprep.subr.bf16.mxu0 0
    %195 = vmatpush1.bf16.msra.mxu0 %v174
    %196 = vmatprep.subr.bf16.mxu0 0
    %197 = vmatpush1.bf16.msra.mxu0 %v175
    %198 = vmatprep.subr.bf16.mxu0 0
    %199 = vmatpush1.bf16.msra.mxu0 %v176
    %200 = vmatprep.subr.bf16.mxu0 0
    %201 = vmatpush1.bf16.msra.mxu0 %v177
    %202 = vmatprep.subr.bf16.mxu0 0
    %203 = vmatpush1.bf16.msra.mxu0 0
    %204 = vmatprep.subr.bf16.mxu0 0
    %205 = vmatpush1.bf16.msra.mxu0 0
    %206 = vmatprep.subr.bf16.mxu0 0
    %207 = vmatpush1.bf16.msra.mxu0 0
    %208 = vmatprep.subr.bf16.mxu0 0
    %209 = vmatpush1.bf16.msra.mxu0 0
    %210 = vmatprep.subr.bf16.mxu0 0
    %211 = vmatpush1.bf16.msra.mxu0 0
    %212 = vmatprep.subr.bf16.mxu0 0
    %213 = vmatpush1.bf16.msra.mxu0 0
    %214 = vmatprep.subr.bf16.mxu0 0
    %215 = vmatpush1.bf16.msra.mxu0 0
    %216 = vmatprep.subr.bf16.mxu0 0
    %217 = vmatpush1.bf16.msra.mxu0 0
    %218 = vmatprep.mubr.bf16.mxu0 0
    %219 = vmatmul.mubr.bf16.gmra.mrb[0].mxu0 %v136
    %v220 = vpop.f32.mrb[0].mxu0
    %v221 = vadd.f32 0.0, %v220
    %v222 = vpop.f32.mrb[0].mxu0
    %v223 = vpop.f32.mrb[0].mxu0
    %v224 = vadd.f32 0.0, %v223
    %v225 = vpop.f32.mrb[0].mxu0
    %226 = vdwg.mxu0
    %v229 = vunpack.c.l.b16 %v96
    %v230 = vunpack.c.l.b16 %v97
    %v231 = vpack.c.b16 %v230, %v229
    %v249 = vunpack.c.l.b16 %v98
    %v250 = vunpack.c.l.b16 %v99
    %v251 = vunpack.c.l.b16 %v100
    %v252 = vunpack.c.l.b16 %v101
    %v253 = vunpack.c.l.b16 %v102
    %v254 = vunpack.c.l.b16 %v103
    %v255 = vunpack.c.l.b16 %v104
    %v256 = vunpack.c.l.b16 %v105
    %v257 = vunpack.c.l.b16 %v106
    %v258 = vunpack.c.l.b16 %v107
    %v259 = vunpack.c.l.b16 %v108
    %v260 = vunpack.c.l.b16 %v109
    %v261 = vunpack.c.l.b16 %v110
    %v262 = vunpack.c.l.b16 %v111
    %v263 = vunpack.c.l.b16 %v112
    %v264 = vunpack.c.l.b16 %v113
    %v265 = vpack.c.b16 %v250, %v249
    %v266 = vpack.c.b16 %v252, %v251
    %v267 = vpack.c.b16 %v254, %v253
    %v268 = vpack.c.b16 %v256, %v255
    %v269 = vpack.c.b16 %v258, %v257
    %v270 = vpack.c.b16 %v260, %v259
    %v271 = vpack.c.b16 %v262, %v261
    %v272 = vpack.c.b16 %v264, %v263
    %281 = vmatprep.subr.bf16.mxu0 0
    %282 = vmatpush1.bf16.msra.mxu0 %v265
    %283 = vmatprep.subr.bf16.mxu0 0
    %284 = vmatpush1.bf16.msra.mxu0 %v266
    %285 = vmatprep.subr.bf16.mxu0 0
    %286 = vmatpush1.bf16.msra.mxu0 %v267
    %287 = vmatprep.subr.bf16.mxu0 0
    %288 = vmatpush1.bf16.msra.mxu0 %v268
    %289 = vmatprep.subr.bf16.mxu0 0
    %290 = vmatpush1.bf16.msra.mxu0 %v269
    %291 = vmatprep.subr.bf16.mxu0 0
    %292 = vmatpush1.bf16.msra.mxu0 %v270
    %293 = vmatprep.subr.bf16.mxu0 0
    %294 = vmatpush1.bf16.msra.mxu0 %v271
    %295 = vmatprep.subr.bf16.mxu0 0
    %296 = vmatpush1.bf16.msra.mxu0 %v272
    %297 = vmatprep.subr.bf16.mxu0 0
    %298 = vmatpush1.bf16.msra.mxu0 0
    %299 = vmatprep.subr.bf16.mxu0 0
    %300 = vmatpush1.bf16.msra.mxu0 0
    %301 = vmatprep.subr.bf16.mxu0 0
    %302 = vmatpush1.bf16.msra.mxu0 0
    %303 = vmatprep.subr.bf16.mxu0 0
    %304 = vmatpush1.bf16.msra.mxu0 0
    %305 = vmatprep.subr.bf16.mxu0 0
    %306 = vmatpush1.bf16.msra.mxu0 0
    %307 = vmatprep.subr.bf16.mxu0 0
    %308 = vmatpush1.bf16.msra.mxu0 0
    %309 = vmatprep.subr.bf16.mxu0 0
    %310 = vmatpush1.bf16.msra.mxu0 0
    %311 = vmatprep.subr.bf16.mxu0 0
    %312 = vmatpush1.bf16.msra.mxu0 0
    %313 = vmatprep.mubr.bf16.mxu0 0
    %314 = vmatmul.mubr.bf16.gmra.mrb[0].mxu0 %v231
    %v315 = vpop.f32.mrb[0].mxu0
    %v316 = vadd.f32 %v221, %v315
    %v317 = vpop.f32.mrb[0].mxu0
    %v318 = vpop.f32.mrb[0].mxu0
    %v319 = vadd.f32 %v224, %v318
    %v320 = vpop.f32.mrb[0].mxu0
    %321 = vdwg.mxu0
    %v322 = vld [vmem:[%s4] sm:$0x1]
    %v324 = vlaneseq
    %v325 = vshrl.u32 %v324, 7
    %v326 = vsub.s32 0, %v325
    %v327 = vrot.slane %v322, %v326
    %v329 = vadd.f32 %v316, %v327
    %v330 = vadd.f32 %v319, %v327
    %v331 = vmax.f32 %v329, 0.0
    %v332 = vmax.f32 %v330, 0.0
    %v333 = vpack.c.bf16 %v332, %v331
    %v334 = vld [vmem:[#allocation10] sm:$0xf]
    %v335 = vld [vmem:[#allocation10 + $0x4] sm:$0xf]
    %v336 = vld [vmem:[#allocation10 + $0x8] sm:$0xf]
    %v337 = vld [vmem:[#allocation10 + $0xc] sm:$0xf]
    %v338 = vld [vmem:[#allocation10 + $0x10] sm:$0xf]
    %v339 = vld [vmem:[#allocation10 + $0x14] sm:$0xf]
    %v340 = vld [vmem:[#allocation10 + $0x18] sm:$0xf]
    %v341 = vld [vmem:[#allocation10 + $0x1c] sm:$0xf]
    %v342 = vld [vmem:[#allocation10 + $0x20] sm:$0xf]
    %v343 = vld [vmem:[#allocation10 + $0x24] sm:$0xf]
    %v344 = vld [vmem:[#allocation10 + $0x28] sm:$0xf]
    %v345 = vld [vmem:[#allocation10 + $0x2c] sm:$0xf]
    %v346 = vld [vmem:[#allocation10 + $0x30] sm:$0xf]
    %v347 = vld [vmem:[#allocation10 + $0x34] sm:$0xf]
    %v348 = vld [vmem:[#allocation10 + $0x38] sm:$0xf]
    %v349 = vld [vmem:[#allocation10 + $0x3c] sm:$0xf]
    %v350 = vld [vmem:[%s6] sm:$0x1]
    %v352 = vlaneseq
    %v353 = vshrl.u32 %v352, 7
    %v354 = vsub.s32 0, %v353
    %v355 = vrot.slane %v350, %v354
    %v373 = vunpack.c.l.b16 %v334
    %v374 = vunpack.c.l.b16 %v335
    %v375 = vunpack.c.l.b16 %v336
    %v376 = vunpack.c.l.b16 %v337
    %v377 = vunpack.c.l.b16 %v338
    %v378 = vunpack.c.l.b16 %v339
    %v379 = vunpack.c.l.b16 %v340
    %v380 = vunpack.c.l.b16 %v341
    %v381 = vunpack.c.l.b16 %v342
    %v382 = vunpack.c.l.b16 %v343
    %v383 = vunpack.c.l.b16 %v344
    %v384 = vunpack.c.l.b16 %v345
    %v385 = vunpack.c.l.b16 %v346
    %v386 = vunpack.c.l.b16 %v347
    %v387 = vunpack.c.l.b16 %v348
    %v388 = vunpack.c.l.b16 %v349
    %v389 = vpack.c.b16 %v374, %v373
    %v390 = vpack.c.b16 %v376, %v375
    %v391 = vpack.c.b16 %v378, %v377
    %v392 = vpack.c.b16 %v380, %v379
    %v393 = vpack.c.b16 %v382, %v381
    %v394 = vpack.c.b16 %v384, %v383
    %v395 = vpack.c.b16 %v386, %v385
    %v396 = vpack.c.b16 %v388, %v387
    %405 = vmatprep.subr.bf16.mxu0 0
    %406 = vmatpush1.bf16.msra.mxu0 %v389
    %407 = vmatprep.subr.bf16.mxu0 0
    %408 = vmatpush1.bf16.msra.mxu0 %v390
    %409 = vmatprep.subr.bf16.mxu0 0
    %410 = vmatpush1.bf16.msra.mxu0 %v391
    %411 = vmatprep.subr.bf16.mxu0 0
    %412 = vmatpush1.bf16.msra.mxu0 %v392
    %413 = vmatprep.subr.bf16.mxu0 0
    %414 = vmatpush1.bf16.msra.mxu0 %v393
    %415 = vmatprep.subr.bf16.mxu0 0
    %416 = vmatpush1.bf16.msra.mxu0 %v394
    %417 = vmatprep.subr.bf16.mxu0 0
    %418 = vmatpush1.bf16.msra.mxu0 %v395
    %419 = vmatprep.subr.bf16.mxu0 0
    %420 = vmatpush1.bf16.msra.mxu0 %v396
    %421 = vmatprep.subr.bf16.mxu0 0
    %422 = vmatpush1.bf16.msra.mxu0 0
    %423 = vmatprep.subr.bf16.mxu0 0
    %424 = vmatpush1.bf16.msra.mxu0 0
    %425 = vmatprep.subr.bf16.mxu0 0
    %426 = vmatpush1.bf16.msra.mxu0 0
    %427 = vmatprep.subr.bf16.mxu0 0
    %428 = vmatpush1.bf16.msra.mxu0 0
    %429 = vmatprep.subr.bf16.mxu0 0
    %430 = vmatpush1.bf16.msra.mxu0 0
    %431 = vmatprep.subr.bf16.mxu0 0
    %432 = vmatpush1.bf16.msra.mxu0 0
    %433 = vmatprep.subr.bf16.mxu0 0
    %434 = vmatpush1.bf16.msra.mxu0 0
    %435 = vmatprep.subr.bf16.mxu0 0
    %436 = vmatpush1.bf16.msra.mxu0 0
    %437 = vmatprep.mubr.bf16.mxu0 0
    %438 = vmatmul.mubr.bf16.gmra.mrb[0].mxu0 %v333
    %v439 = vpop.f32.mrb[0].mxu0
    %v440 = vadd.f32 %v355, %v439
    %v441 = vpop.f32.mrb[0].mxu0
    %v442 = vpop.f32.mrb[0].mxu0
    %v443 = vadd.f32 %v355, %v442
    %v444 = vpop.f32.mrb[0].mxu0
    %445 = vdwg.mxu0
    %446 = vst [vmem:[#allocation11] sm:$0xff] %v440
    %447 = vst [vmem:[#allocation11 + $0x8] sm:$0xff] %v443
    // Predicated region
    $region50: #{tpu_custom_call.1} parent=1 // pred_check
      _
    $region51: #{tpu_custom_call.1} parent=1 // pred_check_branch
      %449 = sbr.rel (0) target = $region53
    $region52: #{tpu_custom_call.1} parent=1 // pred_region
      %s451 = ssub.s32 256, 256
      %452 = vsyncadd [#allocation4], %s451
      %s453 = sshll.u32 [#allocation11], 4
      %s454 = int_to_ptr.vmem [resolvable:$true] %s453
      %459 = dma.vmem_to_hbm [thread:$0]  %s454, 256, %s7, [#allocation4], 128, 128, 8
    $region53: #{tpu_custom_call.1} parent=1 // pred_fallthru
      _
    // Predicated region
    $region54: #{tpu_custom_call.1} parent=1 // pred_check
      _
    $region55: #{tpu_custom_call.1} parent=1 // pred_check_branch
      %461 = sbr.rel (0) target = $region57
    $region56: #{tpu_custom_call.1} parent=1 // pred_region
      %462 = dma.done [#allocation4], 256
    $region57: #{tpu_custom_call.1} parent=1 // pred_fallthru
      _
    %463 = vsyncpa [#allocation3], 1
    %464 = vsyncpa [#allocation6], 1
    %465 = vsyncpa [#allocation9], 1
    %466 = vsyncpa [#allocation4], 1

// kernel: tpu_custom_call.1
$region0: #{tpu_custom_call.1}
  #allocation0 [shape = 'u32[]', space=smem, size = 0x4, offset = 0x4, fixed_abs, tag = 'smem constant byte address 0x4 - core index']
  #allocation1 [shape = 'u32[144,128]{1,0:T(1,128)}', space=vmem, size = 0x12000, scoped, tag = 'internal scratch']
  %s0 = inlined_call_operand.hbm [shape: bf16[16,128], index: 0, kind: input, shape index: {}]
  %s1 = inlined_call_operand.hbm [shape: bf16[16,128], index: 1, kind: input, shape index: {}]
  %s2 = inlined_call_operand.hbm [shape: bf16[128,128], index: 2, kind: input, shape index: {}]
  %s3 = inlined_call_operand.hbm [shape: bf16[128,128], index: 3, kind: input, shape index: {}]
  %s4 = inlined_call_operand.vmem [shape: f32[1,128], index: 4, kind: input, shape index: {}]
  %s5 = inlined_call_operand.hbm [shape: bf16[128,128], index: 5, kind: input, shape index: {}]
  %s6 = inlined_call_operand.vmem [shape: f32[1,128], index: 6, kind: input, shape index: {}]
  %s7 = inlined_call_operand.hbm [shape: f32[16,128], index: 7, kind: output, shape index: {}]
  %s8 = sld [smem:[#allocation0]]
  $region58: #{tpu_custom_call.1} parent=0
    _
  %s10 = ssub.s32 1, %s8
  %s11 = scalar_select 0, %s10, %s8
  $region1: #{tpu_custom_call.1} parent=0
    #allocation2 [shape = 'u8[4096]{0}', space=vmem, size = 0x1000, scoped, tag = 'input window, operand 0, single buffered']
    #allocation3 [shape = 's32[1]{0}', space=sflag, size = 0x4, scoped, tag = 'scoped memory for tpu_custom_call.1']
    #allocation4 [shape = 's32[1]{0}', space=sflag, size = 0x4, scoped, tag = 'scoped memory for tpu_custom_call.1']
    #allocation5 [shape = 'u8[4096]{0}', space=vmem, size = 0x1000, scoped, tag = 'input window, operand 1, single buffered']
    #allocation6 [shape = 's32[1]{0}', space=sflag, size = 0x4, scoped, tag = 'scoped memory for tpu_custom_call.1']
    #allocation7 [shape = 'u8[32768]{0}', space=vmem, size = 0x8000, scoped, tag = 'input window, operand 2, single buffered']
    #allocation8 [shape = 'u8[32768]{0}', space=vmem, size = 0x8000, scoped, tag = 'input window, operand 3, single buffered']
    #allocation9 [shape = 's32[1]{0}', space=sflag, size = 0x4, scoped, tag = 'scoped memory for tpu_custom_call.1']
    #allocation10 [shape = 'u8[32768]{0}', space=vmem, size = 0x8000, scoped, tag = 'input window, operand 5, single buffered']
    #allocation11 [shape = 'u8[8192]{0}', space=vmem, size = 0x2000, scoped, tag = 'output window, operand 0, single buffered']
    %12 = vsyncpa [#allocation3], 0
    %13 = vsyncpa [#allocation6], 0
    %14 = vsyncpa [#allocation9], 0
    %15 = vsyncpa [#allocation4], 0
    // Predicated region
    $region2: #{tpu_custom_call.1} parent=1 // pred_check
      _
    $region3: #{tpu_custom_call.1} parent=1 // pred_check_branch
      %17 = sbr.rel (0) target = $region5
    $region4: #{tpu_custom_call.1} parent=1 // pred_region
      %s19 = ssub.s32 128, 128
      %20 = vsyncadd [#allocation3], %s19
      %s21 = sshll.u32 [#allocation2], 4
      %s22 = int_to_ptr.vmem [resolvable:$true] %s21
      %27 = dma.hbm_to_vmem [thread:$0]  %s0, 128, %s22, [#allocation3], 64, 64, 4
    $region5: #{tpu_custom_call.1} parent=1 // pred_fallthru
      _
    // Predicated region
    $region6: #{tpu_custom_call.1} parent=1 // pred_check
      _
    $region7: #{tpu_custom_call.1} parent=1 // pred_check_branch
      %29 = sbr.rel (0) target = $region9
    $region8: #{tpu_custom_call.1} parent=1 // pred_region
      %s31 = ssub.s32 128, 128
      %32 = vsyncadd [#allocation6], %s31
      %s33 = sshll.u32 [#allocation5], 4
      %s34 = int_to_ptr.vmem [resolvable:$true] %s33
      %39 = dma.hbm_to_vmem [thread:$0]  %s1, 128, %s34, [#allocation6], 64, 64, 4
    $region9: #{tpu_custom_call.1} parent=1 // pred_fallthru
      _
    // Predicated region
    $region10: #{tpu_custom_call.1} parent=1 // pred_check
      _
    $region11: #{tpu_custom_call.1} parent=1 // pred_check_branch
      %41 = sbr.rel (0) target = $region13
    $region12: #{tpu_custom_call.1} parent=1 // pred_region
      %s43 = ssub.s32 1024, 1024
      %44 = vsyncadd [#allocation6], %s43
      %s45 = sshll.u32 [#allocation7], 4
      %s46 = int_to_ptr.vmem [resolvable:$true] %s45
      %51 = dma.hbm_to_vmem [thread:$0]  %s2, 1024, %s46, [#allocation6], 64, 64, 4
    $region13: #{tpu_custom_call.1} parent=1 // pred_fallthru
      _
    // Predicated region
    $region14: #{tpu_custom_call.1} parent=1 // pred_check
      _
    $region15: #{tpu_custom_call.1} parent=1 // pred_check_branch
      %53 = sbr.rel (0) target = $region17
    $region16: #{tpu_custom_call.1} parent=1 // pred_region
      %s55 = ssub.s32 1024, 1024
      %56 = vsyncadd [#allocation9], %s55
      %s57 = sshll.u32 [#allocation8], 4
      %s58 = int_to_ptr.vmem [resolvable:$true] %s57
      %63 = dma.hbm_to_vmem [thread:$0]  %s3, 1024, %s58, [#allocation9], 64, 64, 4
    $region17: #{tpu_custom_call.1} parent=1 // pred_fallthru
      _
    // Predicated region
    $region18: #{tpu_custom_call.1} parent=1 // pred_check
      _
    $region19: #{tpu_custom_call.1} parent=1 // pred_check_branch
      %65 = sbr.rel (0) target = $region21
    $region20: #{tpu_custom_call.1} parent=1 // pred_region
      _
    $region21: #{tpu_custom_call.1} parent=1 // pred_fallthru
      _
    // Predicated region
    $region22: #{tpu_custom_call.1} parent=1 // pred_check
      _
    $region23: #{tpu_custom_call.1} parent=1 // pred_check_branch
      %67 = sbr.rel (0) target = $region25
    $region24: #{tpu_custom_call.1} parent=1 // pred_region
      %s69 = ssub.s32 1024, 1024
      %70 = vsyncadd [#allocation9], %s69
      %s71 = sshll.u32 [#allocation10], 4
      %s72 = int_to_ptr.vmem [resolvable:$true] %s71
      %77 = dma.hbm_to_vmem [thread:$0]  %s5, 1024, %s72, [#allocation9], 64, 64, 4
    $region25: #{tpu_custom_call.1} parent=1 // pred_fallthru
      _
    // Predicated region
    $region26: #{tpu_custom_call.1} parent=1 // pred_check
      _
    $region27: #{tpu_custom_call.1} parent=1 // pred_check_branch
      %79 = sbr.rel (0) target = $region29
    $region28: #{tpu_custom_call.1} parent=1 // pred_region
      _
    $region29: #{tpu_custom_call.1} parent=1 // pred_fallthru
      _
    // Predicated region
    $region30: #{tpu_custom_call.1} parent=1 // pred_check
      _
    $region31: #{tpu_custom_call.1} parent=1 // pred_check_branch
      %81 = sbr.rel (0) target = $region33
    $region32: #{tpu_custom_call.1} parent=1 // pred_region
      %82 = dma.done [#allocation3], 128
    $region33: #{tpu_custom_call.1} parent=1 // pred_fallthru
      _
    // Predicated region
    $region34: #{tpu_custom_call.1} parent=1 // pred_check
      _
    $region35: #{tpu_custom_call.1} parent=1 // pred_check_branch
      %84 = sbr.rel (0) target = $region37
    $region36: #{tpu_custom_call.1} parent=1 // pred_region
      %85 = dma.done [#allocation6], 128
    $region37: #{tpu_custom_call.1} parent=1 // pred_fallthru
      _
    // Predicated region
    $region38: #{tpu_custom_call.1} parent=1 // pred_check
      _
    $region39: #{tpu_custom_call.1} parent=1 // pred_check_branch
      %87 = sbr.rel (0) target = $region41
    $region40: #{tpu_custom_call.1} parent=1 // pred_region
      %88 = dma.done [#allocation6], 1024
    $region41: #{tpu_custom_call.1} parent=1 // pred_fallthru
      _
    // Predicated region
    $region42: #{tpu_custom_call.1} parent=1 // pred_check
      _
    $region43: #{tpu_custom_call.1} parent=1 // pred_check_branch
      %90 = sbr.rel (0) target = $region45
    $region44: #{tpu_custom_call.1} parent=1 // pred_region
      %91 = dma.done [#allocation9], 1024
    $region45: #{tpu_custom_call.1} parent=1 // pred_fallthru
      _
    // Predicated region
    $region46: #{tpu_custom_call.1} parent=1 // pred_check
      _
    $region47: #{tpu_custom_call.1} parent=1 // pred_check_branch
      %93 = sbr.rel (0) target = $region49
    $region48: #{tpu_custom_call.1} parent=1 // pred_region
      %94 = dma.done [#allocation9], 1024
    $region49: #{tpu_custom_call.1} parent=1 // pred_fallthru
      _
    %v96 = vld [vmem:[#allocation2] sm:$0xf]
    %v97 = vld [vmem:[#allocation2 + $0x4] sm:$0xf]
    %v98 = vld [vmem:[#allocation7] sm:$0xf]
    %v99 = vld [vmem:[#allocation7 + $0x4] sm:$0xf]
    %v100 = vld [vmem:[#allocation7 + $0x8] sm:$0xf]
    %v101 = vld [vmem:[#allocation7 + $0xc] sm:$0xf]
    %v102 = vld [vmem:[#allocation7 + $0x10] sm:$0xf]
    %v103 = vld [vmem:[#allocation7 + $0x14] sm:$0xf]
    %v104 = vld [vmem:[#allocation7 + $0x18] sm:$0xf]
    %v105 = vld [vmem:[#allocation7 + $0x1c] sm:$0xf]
    %v106 = vld [vmem:[#allocation7 + $0x20] sm:$0xf]
    %v107 = vld [vmem:[#allocation7 + $0x24] sm:$0xf]
    %v108 = vld [vmem:[#allocation7 + $0x28] sm:$0xf]
    %v109 = vld [vmem:[#allocation7 + $0x2c] sm:$0xf]
    %v110 = vld [vmem:[#allocation7 + $0x30] sm:$0xf]
    %v111 = vld [vmem:[#allocation7 + $0x34] sm:$0xf]
    %v112 = vld [vmem:[#allocation7 + $0x38] sm:$0xf]
    %v113 = vld [vmem:[#allocation7 + $0x3c] sm:$0xf]
    %v114 = vld [vmem:[#allocation5] sm:$0xf]
    %v115 = vld [vmem:[#allocation5 + $0x4] sm:$0xf]
    %v116 = vld [vmem:[#allocation8] sm:$0xf]
    %v117 = vld [vmem:[#allocation8 + $0x4] sm:$0xf]
    %v118 = vld [vmem:[#allocation8 + $0x8] sm:$0xf]
    %v119 = vld [vmem:[#allocation8 + $0xc] sm:$0xf]
    %v120 = vld [vmem:[#allocation8 + $0x10] sm:$0xf]
    %v121 = vld [vmem:[#allocation8 + $0x14] sm:$0xf]
    %v122 = vld [vmem:[#allocation8 + $0x18] sm:$0xf]
    %v123 = vld [vmem:[#allocation8 + $0x1c] sm:$0xf]
    %v124 = vld [vmem:[#allocation8 + $0x20] sm:$0xf]
    %v125 = vld [vmem:[#allocation8 + $0x24] sm:$0xf]
    %v126 = vld [vmem:[#allocation8 + $0x28] sm:$0xf]
    %v127 = vld [vmem:[#allocation8 + $0x2c] sm:$0xf]
    %v128 = vld [vmem:[#allocation8 + $0x30] sm:$0xf]
    %v129 = vld [vmem:[#allocation8 + $0x34] sm:$0xf]
    %v130 = vld [vmem:[#allocation8 + $0x38] sm:$0xf]
    %v131 = vld [vmem:[#allocation8 + $0x3c] sm:$0xf]
    %v134 = vunpack.c.l.b16 %v114
    %v135 = vunpack.c.l.b16 %v115
    %v136 = vpack.c.b16 %v135, %v134
    %v154 = vunpack.c.l.b16 %v116
    %v155 = vunpack.c.l.b16 %v117
    %v156 = vunpack.c.l.b16 %v118
    %v157 = vunpack.c.l.b16 %v119
    %v158 = vunpack.c.l.b16 %v120
    %v159 = vunpack.c.l.b16 %v121
    %v160 = vunpack.c.l.b16 %v122
    %v161 = vunpack.c.l.b16 %v123
    %v162 = vunpack.c.l.b16 %v124
    %v163 = vunpack.c.l.b16 %v125
    %v164 = vunpack.c.l.b16 %v126
    %v165 = vunpack.c.l.b16 %v127
    %v166 = vunpack.c.l.b16 %v128
    %v167 = vunpack.c.l.b16 %v129
    %v168 = vunpack.c.l.b16 %v130
    %v169 = vunpack.c.l.b16 %v131
    %v170 = vpack.c.b16 %v155, %v154
    %v171 = vpack.c.b16 %v157, %v156
    %v172 = vpack.c.b16 %v159, %v158
    %v173 = vpack.c.b16 %v161, %v160
    %v174 = vpack.c.b16 %v163, %v162
    %v175 = vpack.c.b16 %v165, %v164
    %v176 = vpack.c.b16 %v167, %v166
    %v177 = vpack.c.b16 %v169, %v168
    %186 = vmatprep.subr.bf16.mxu0 0
    %187 = vmatpush1.bf16.msra.mxu0 %v170
    %188 = vmatprep.subr.bf16.mxu0 0
    %189 = vmatpush1.bf16.msra.mxu0 %v171
    %190 = vmatprep.subr.bf16.mxu0 0
    %191 = vmatpush1.bf16.msra.mxu0 %v172
    %192 = vmatprep.subr.bf16.mxu0 0
    %193 = vmatpush1.bf16.msra.mxu0 %v173
    %194 = vmatprep.subr.bf16.mxu0 0
    %195 = vmatpush1.bf16.msra.mxu0 %v174
    %196 = vmatprep.subr.bf16.mxu0 0
    %197 = vmatpush1.bf16.msra.mxu0 %v175
    %198 = vmatprep.subr.bf16.mxu0 0
    %199 = vmatpush1.bf16.msra.mxu0 %v176
    %200 = vmatprep.subr.bf16.mxu0 0
    %201 = vmatpush1.bf16.msra.mxu0 %v177
    %202 = vmatprep.subr.bf16.mxu0 0
    %203 = vmatpush1.bf16.msra.mxu0 0
    %204 = vmatprep.subr.bf16.mxu0 0
    %205 = vmatpush1.bf16.msra.mxu0 0
    %206 = vmatprep.subr.bf16.mxu0 0
    %207 = vmatpush1.bf16.msra.mxu0 0
    %208 = vmatprep.subr.bf16.mxu0 0
    %209 = vmatpush1.bf16.msra.mxu0 0
    %210 = vmatprep.subr.bf16.mxu0 0
    %211 = vmatpush1.bf16.msra.mxu0 0
    %212 = vmatprep.subr.bf16.mxu0 0
    %213 = vmatpush1.bf16.msra.mxu0 0
    %214 = vmatprep.subr.bf16.mxu0 0
    %215 = vmatpush1.bf16.msra.mxu0 0
    %216 = vmatprep.subr.bf16.mxu0 0
    %217 = vmatpush1.bf16.msra.mxu0 0
    %218 = vmatprep.mubr.bf16.mxu0 0
    %219 = vmatmul.mubr.bf16.gmra.mrb[0].mxu0 %v136
    %v220 = vpop.f32.mrb[0].mxu0
    %v221 = vadd.f32 0.0, %v220
    %v222 = vpop.f32.mrb[0].mxu0
    %v223 = vpop.f32.mrb[0].mxu0
    %v224 = vadd.f32 0.0, %v223
    %v225 = vpop.f32.mrb[0].mxu0
    %226 = vdwg.mxu0
    %v229 = vunpack.c.l.b16 %v96
    %v230 = vunpack.c.l.b16 %v97
    %v231 = vpack.c.b16 %v230, %v229
    %v249 = vunpack.c.l.b16 %v98
    %v250 = vunpack.c.l.b16 %v99
    %v251 = vunpack.c.l.b16 %v100
    %v252 = vunpack.c.l.b16 %v101
    %v253 = vunpack.c.l.b16 %v102
    %v254 = vunpack.c.l.b16 %v103
    %v255 = vunpack.c.l.b16 %v104
    %v256 = vunpack.c.l.b16 %v105
    %v257 = vunpack.c.l.b16 %v106
    %v258 = vunpack.c.l.b16 %v107
    %v259 = vunpack.c.l.b16 %v108
    %v260 = vunpack.c.l.b16 %v109
    %v261 = vunpack.c.l.b16 %v110
    %v262 = vunpack.c.l.b16 %v111
    %v263 = vunpack.c.l.b16 %v112
    %v264 = vunpack.c.l.b16 %v113
    %v265 = vpack.c.b16 %v250, %v249
    %v266 = vpack.c.b16 %v252, %v251
    %v267 = vpack.c.b16 %v254, %v253
    %v268 = vpack.c.b16 %v256, %v255
    %v269 = vpack.c.b16 %v258, %v257
    %v270 = vpack.c.b16 %v260, %v259
    %v271 = vpack.c.b16 %v262, %v261
    %v272 = vpack.c.b16 %v264, %v263
    %281 = vmatprep.subr.bf16.mxu0 0
    %282 = vmatpush1.bf16.msra.mxu0 %v265
    %283 = vmatprep.subr.bf16.mxu0 0
    %284 = vmatpush1.bf16.msra.mxu0 %v266
    %285 = vmatprep.subr.bf16.mxu0 0
    %286 = vmatpush1.bf16.msra.mxu0 %v267
    %287 = vmatprep.subr.bf16.mxu0 0
    %288 = vmatpush1.bf16.msra.mxu0 %v268
    %289 = vmatprep.subr.bf16.mxu0 0
    %290 = vmatpush1.bf16.msra.mxu0 %v269
    %291 = vmatprep.subr.bf16.mxu0 0
    %292 = vmatpush1.bf16.msra.mxu0 %v270
    %293 = vmatprep.subr.bf16.mxu0 0
    %294 = vmatpush1.bf16.msra.mxu0 %v271
    %295 = vmatprep.subr.bf16.mxu0 0
    %296 = vmatpush1.bf16.msra.mxu0 %v272
    %297 = vmatprep.subr.bf16.mxu0 0
    %298 = vmatpush1.bf16.msra.mxu0 0
    %299 = vmatprep.subr.bf16.mxu0 0
    %300 = vmatpush1.bf16.msra.mxu0 0
    %301 = vmatprep.subr.bf16.mxu0 0
    %302 = vmatpush1.bf16.msra.mxu0 0
    %303 = vmatprep.subr.bf16.mxu0 0
    %304 = vmatpush1.bf16.msra.mxu0 0
    %305 = vmatprep.subr.bf16.mxu0 0
    %306 = vmatpush1.bf16.msra.mxu0 0
    %307 = vmatprep.subr.bf16.mxu0 0
    %308 = vmatpush1.bf16.msra.mxu0 0
    %309 = vmatprep.subr.bf16.mxu0 0
    %310 = vmatpush1.bf16.msra.mxu0 0
    %311 = vmatprep.subr.bf16.mxu0 0
    %312 = vmatpush1.bf16.msra.mxu0 0
    %313 = vmatprep.mubr.bf16.mxu0 0
    %314 = vmatmul.mubr.bf16.gmra.mrb[0].mxu0 %v231
    %v315 = vpop.f32.mrb[0].mxu0
    %v316 = vadd.f32 %v221, %v315
    %v317 = vpop.f32.mrb[0].mxu0
    %v318 = vpop.f32.mrb[0].mxu0
    %v319 = vadd.f32 %v224, %v318
    %v320 = vpop.f32.mrb[0].mxu0
    %321 = vdwg.mxu0
    %v322 = vld [vmem:[%s4] sm:$0x1]
    %v324 = vlaneseq
    %v325 = vshrl.u32 %v324, 7
    %v326 = vsub.s32 0, %v325
    %v327 = vrot.slane %v322, %v326
    %v329 = vadd.f32 %v316, %v327
    %v330 = vadd.f32 %v319, %v327
    %v331 = vmax.f32 %v329, 0.0
    %v332 = vmax.f32 %v330, 0.0
    %v333 = vpack.c.bf16 %v332, %v331
    %v334 = vld [vmem:[#allocation10] sm:$0xf]
    %v335 = vld [vmem:[#allocation10 + $0x4] sm:$0xf]
    %v336 = vld [vmem:[#allocation10 + $0x8] sm:$0xf]
    %v337 = vld [vmem:[#allocation10 + $0xc] sm:$0xf]
    %v338 = vld [vmem:[#allocation10 + $0x10] sm:$0xf]
    %v339 = vld [vmem:[#allocation10 + $0x14] sm:$0xf]
    %v340 = vld [vmem:[#allocation10 + $0x18] sm:$0xf]
    %v341 = vld [vmem:[#allocation10 + $0x1c] sm:$0xf]
    %v342 = vld [vmem:[#allocation10 + $0x20] sm:$0xf]
    %v343 = vld [vmem:[#allocation10 + $0x24] sm:$0xf]
    %v344 = vld [vmem:[#allocation10 + $0x28] sm:$0xf]
    %v345 = vld [vmem:[#allocation10 + $0x2c] sm:$0xf]
    %v346 = vld [vmem:[#allocation10 + $0x30] sm:$0xf]
    %v347 = vld [vmem:[#allocation10 + $0x34] sm:$0xf]
    %v348 = vld [vmem:[#allocation10 + $0x38] sm:$0xf]
    %v349 = vld [vmem:[#allocation10 + $0x3c] sm:$0xf]
    %v350 = vld [vmem:[%s6] sm:$0x1]
    %v352 = vlaneseq
    %v353 = vshrl.u32 %v352, 7
    %v354 = vsub.s32 0, %v353
    %v355 = vrot.slane %v350, %v354
    %v373 = vunpack.c.l.b16 %v334
    %v374 = vunpack.c.l.b16 %v335
    %v375 = vunpack.c.l.b16 %v336
    %v376 = vunpack.c.l.b16 %v337
    %v377 = vunpack.c.l.b16 %v338
    %v378 = vunpack.c.l.b16 %v339
    %v379 = vunpack.c.l.b16 %v340
    %v380 = vunpack.c.l.b16 %v341
    %v381 = vunpack.c.l.b16 %v342
    %v382 = vunpack.c.l.b16 %v343
    %v383 = vunpack.c.l.b16 %v344
    %v384 = vunpack.c.l.b16 %v345
    %v385 = vunpack.c.l.b16 %v346
    %v386 = vunpack.c.l.b16 %v347
    %v387 = vunpack.c.l.b16 %v348
    %v388 = vunpack.c.l.b16 %v349
    %v389 = vpack.c.b16 %v374, %v373
    %v390 = vpack.c.b16 %v376, %v375
    %v391 = vpack.c.b16 %v378, %v377
    %v392 = vpack.c.b16 %v380, %v379
    %v393 = vpack.c.b16 %v382, %v381
    %v394 = vpack.c.b16 %v384, %v383
    %v395 = vpack.c.b16 %v386, %v385
    %v396 = vpack.c.b16 %v388, %v387
    %405 = vmatprep.subr.bf16.mxu0 0
    %406 = vmatpush1.bf16.msra.mxu0 %v389
    %407 = vmatprep.subr.bf16.mxu0 0
    %408 = vmatpush1.bf16.msra.mxu0 %v390
    %409 = vmatprep.subr.bf16.mxu0 0
    %410 = vmatpush1.bf16.msra.mxu0 %v391
    %411 = vmatprep.subr.bf16.mxu0 0
    %412 = vmatpush1.bf16.msra.mxu0 %v392
    %413 = vmatprep.subr.bf16.mxu0 0
    %414 = vmatpush1.bf16.msra.mxu0 %v393
    %415 = vmatprep.subr.bf16.mxu0 0
    %416 = vmatpush1.bf16.msra.mxu0 %v394
    %417 = vmatprep.subr.bf16.mxu0 0
    %418 = vmatpush1.bf16.msra.mxu0 %v395
    %419 = vmatprep.subr.bf16.mxu0 0
    %420 = vmatpush1.bf16.msra.mxu0 %v396
    %421 = vmatprep.subr.bf16.mxu0 0
    %422 = vmatpush1.bf16.msra.mxu0 0
    %423 = vmatprep.subr.bf16.mxu0 0
    %424 = vmatpush1.bf16.msra.mxu0 0
    %425 = vmatprep.subr.bf16.mxu0 0
    %426 = vmatpush1.bf16.msra.mxu0 0
    %427 = vmatprep.subr.bf16.mxu0 0
    %428 = vmatpush1.bf16.msra.mxu0 0
    %429 = vmatprep.subr.bf16.mxu0 0
    %430 = vmatpush1.bf16.msra.mxu0 0
    %431 = vmatprep.subr.bf16.mxu0 0
    %432 = vmatpush1.bf16.msra.mxu0 0
    %433 = vmatprep.subr.bf16.mxu0 0
    %434 = vmatpush1.bf16.msra.mxu0 0
    %435 = vmatprep.subr.bf16.mxu0 0
    %436 = vmatpush1.bf16.msra.mxu0 0
    %437 = vmatprep.mubr.bf16.mxu0 0
    %438 = vmatmul.mubr.bf16.gmra.mrb[0].mxu0 %v333
    %v439 = vpop.f32.mrb[0].mxu0
    %v440 = vadd.f32 %v355, %v439
    %v441 = vpop.f32.mrb[0].mxu0
    %v442 = vpop.f32.mrb[0].mxu0
    %v443 = vadd.f32 %v355, %v442
    %v444 = vpop.f32.mrb[0].mxu0
    %445 = vdwg.mxu0
    %446 = vst [vmem:[#allocation11] sm:$0xff] %v440
    %447 = vst [vmem:[#allocation11 + $0x8] sm:$0xff] %v443
    // Predicated region
    $region50: #{tpu_custom_call.1} parent=1 // pred_check
      _
    $region51: #{tpu_custom_call.1} parent=1 // pred_check_branch
      %449 = sbr.rel (0) target = $region53
    $region52: #{tpu_custom_call.1} parent=1 // pred_region
      %s451 = ssub.s32 256, 256
      %452 = vsyncadd [#allocation4], %s451
      %s453 = sshll.u32 [#allocation11], 4
      %s454 = int_to_ptr.vmem [resolvable:$true] %s453
      %459 = dma.vmem_to_hbm [thread:$0]  %s454, 256, %s7, [#allocation4], 128, 128, 8
    $region53: #{tpu_custom_call.1} parent=1 // pred_fallthru
      _
    // Predicated region
    $region54: #{tpu_custom_call.1} parent=1 // pred_check
      _
    $region55: #{tpu_custom_call.1} parent=1 // pred_check_branch
      %461 = sbr.rel (0) target = $region57
    $region56: #{tpu_custom_call.1} parent=1 // pred_region
      %462 = dma.done [#allocation4], 256
    $region57: #{tpu_custom_call.1} parent=1 // pred_fallthru
      _
    %463 = vsyncpa [#allocation3], 1
    %464 = vsyncpa [#allocation6], 1
    %465 = vsyncpa [#allocation9], 1
    %466 = vsyncpa [#allocation4], 1

</llo_original>
